<compile_context>
chip_gen: v6e
topology: v6e:2x2x1
jax: 0.10.0
libtpu: 0.0.40
codegen_flags: <defaults>
</compile_context>

<pallas_src>
import jax
import jax.numpy as jnp
from jax.experimental import pallas as pl
from jax.experimental.pallas import tpu as pltpu

_INV_SQRT2 = 0.7071067811865476


def _erf(x):
    # Abramowitz & Stegun 7.1.26 rational approximation (max abs err ~1.5e-7),
    # built only from ops that always lower in Mosaic (abs/exp/mul/where).
    # Matches torch nn.GELU()'s exact-erf formulation to well under 1e-5.
    p = 0.3275911
    a1, a2, a3, a4, a5 = (0.254829592, -0.284496736, 1.421413741,
                          -1.453152027, 1.061405429)
    ax = jnp.abs(x)
    t = 1.0 / (1.0 + p * ax)
    poly = ((((a5 * t + a4) * t + a3) * t + a2) * t + a1) * t
    y = 1.0 - poly * jnp.exp(-(ax * ax))
    return jnp.where(x >= 0, y, -y)


def _add_pos_gelu(word_rows, pos_rows):
    emb = word_rows.astype(jnp.float32) + pos_rows.astype(jnp.float32)
    return 0.5 * emb * (1.0 + _erf(emb * _INV_SQRT2))


def _kernel_vmem_table(ids_ref, wemb_ref, pemb_ref, out_ref):
    """Word table resident in VMEM; gather rows with dynamic VMEM loads.

    ids_ref  : (B, S) int32 in SMEM (scalar prefetch)
    wemb_ref : (V, H) full word-embedding table in VMEM (constant block index)
    pemb_ref : (tile_s, H) VMEM tile of positional rows [st*tile_s, ...)
    out_ref  : (tile_s, H) VMEM output tile (batch dim squeezed)
    """
    b = pl.program_id(0)
    st = pl.program_id(1)
    tile_s = out_ref.shape[0]
    base = st * tile_s

    # Gather token rows straight into the output tile: one dynamic vld + vst
    # per row, no DMAs, no scratch.  (Like nn.Embedding, ids assumed in-range.)
    for local in range(tile_s):  # static unrolled gather loop
        tok = ids_ref[b, base + local]
        out_ref[pl.ds(local, 1), :] = wemb_ref[pl.ds(tok, 1), :]

    out_ref[...] = _add_pos_gelu(out_ref[...], pemb_ref[...]).astype(out_ref.dtype)


def _kernel_hbm_gather(ids_ref, wemb_hbm, pemb_ref, out_ref, wrows, sems):
    """Fallback for large vocabularies: per-row async DMA gather from HBM.

    wemb_hbm : (V, H) word-embedding table, left in HBM (pl.ANY)
    wrows    : (tile_s, H) VMEM scratch for gathered word-embedding rows
    sems     : (tile_s,) DMA semaphores, one per in-flight row copy
    """
    b = pl.program_id(0)
    st = pl.program_id(1)
    tile_s = wrows.shape[0]
    base = st * tile_s

    # Start all row copies, then wait: copies are all in flight concurrently.
    copies = []
    for local in range(tile_s):  # static unrolled gather loop
        tok = ids_ref[b, base + local]
        cp = pltpu.make_async_copy(
            wemb_hbm.at[pl.ds(tok, 1), :],
            wrows.at[pl.ds(local, 1), :],
            sems.at[local],
        )
        cp.start()
        copies.append(cp)
    for cp in copies:
        cp.wait()

    out_ref[...] = _add_pos_gelu(wrows[...], pemb_ref[...]).astype(out_ref.dtype)


def _choose_seq_tile(S, target=128):
    """Largest multiple-of-8 divisor of S that is <= target (or S itself)."""
    if S <= target:
        return S
    best = S
    for t in range(8, target + 1, 8):
        if S % t == 0:
            best = t
    return best


def positional_embedding(input_seq, word_emb, pos_emb, *,
                         vmem_table_budget_bytes=4 * 1024 * 1024):
    B, S = input_seq.shape
    V, H = word_emb.shape
    L, H2 = pos_emb.shape
    assert H == H2 and S <= L

    tile_s = _choose_seq_tile(S)
    assert S % tile_s == 0
    num_s_tiles = S // tile_s
    # (8, 128) block rule: tile_s must be a multiple of 8 or the full seq dim.
    assert tile_s % 8 == 0 or tile_s == S

    # Only the first S rows of the positional table are ever used; slicing here
    # avoids moving unused rows and keeps the BlockSpec legal (full dim) even
    # when S is not a multiple of 8.
    pos_used = pos_emb[:S]

    table_bytes = V * H * jnp.dtype(word_emb.dtype).itemsize
    use_vmem_table = table_bytes <= vmem_table_budget_bytes

    if use_vmem_table:
        kernel = _kernel_vmem_table
        # Constant block index -> table is fetched once and stays resident.
        wemb_spec = pl.BlockSpec((V, H), lambda b, st, ids: (0, 0))
        scratch_shapes = []
    else:
        kernel = _kernel_hbm_gather
        wemb_spec = pl.BlockSpec(memory_space=pl.ANY)  # raw HBM ref, manual DMA
        scratch_shapes = [
            pltpu.VMEM((tile_s, H), word_emb.dtype),
            pltpu.SemaphoreType.DMA((tile_s,)),
        ]

    grid_spec = pltpu.PrefetchScalarGridSpec(
        num_scalar_prefetch=1,          # ids -> SMEM (also visible to index_maps)
        grid=(B, num_s_tiles),
        in_specs=[
            wemb_spec,
            pl.BlockSpec((tile_s, H), lambda b, st, ids: (st, 0)),  # used pos rows
        ],
        out_specs=pl.BlockSpec((None, tile_s, H),                   # lane-dense slab
                               lambda b, st, ids: (b, st, 0)),
        scratch_shapes=scratch_shapes,
    )

    return pl.pallas_call(
        kernel,
        out_shape=jax.ShapeDtypeStruct((B, S, H), jnp.float32),
        grid_spec=grid_spec,
        compiler_params=pltpu.CompilerParams(
            # Independent output tiles -> both axes parallel (v7x: 2 TCs/chip).
            dimension_semantics=("parallel", "parallel"),
        ),
    )(input_seq.astype(jnp.int32), word_emb, pos_used)


def _reference(input_seq, word_emb, pos_emb):
    S = input_seq.shape[-1]
    w = word_emb[input_seq]                      # (B, S, H)
    p = pos_emb[jnp.arange(S)][None, :, :]       # (1, S, H)
    return jax.nn.gelu(w + p, approximate=False)


if __name__ == "__main__":
    vocab_size, hidden_size, max_seq_len = 16, 32, 16
    batch, seq = 2, 8

    key = jax.random.PRNGKey(0)
    k_ids, k_w, k_p = jax.random.split(key, 3)

    input_seq = jax.random.randint(k_ids, (batch, seq), 0, vocab_size, dtype=jnp.int32)
    word_emb = jax.random.normal(k_w, (vocab_size, hidden_size), dtype=jnp.float32)
    pos_emb = jax.random.normal(k_p, (max_seq_len, hidden_size), dtype=jnp.float32)

    out = positional_embedding(input_seq, word_emb, pos_emb)
    out = jax.block_until_ready(out)

    ref = _reference(input_seq, word_emb, pos_emb)
    assert out.shape == (batch, seq, hidden_size)
    assert jnp.allclose(out, ref, atol=1e-5, rtol=1e-5), "mismatch vs reference"

    # Also exercise the large-vocab HBM-gather path (budget forced to 0).
    out_hbm = positional_embedding(input_seq, word_emb, pos_emb,
                                   vmem_table_budget_bytes=0)
    out_hbm = jax.block_until_ready(out_hbm)
    assert jnp.allclose(out_hbm, ref, atol=1e-5, rtol=1e-5), "HBM path mismatch"

    print("KERNEL_OK")
</pallas_src>

<mosaic_0001>
module attributes {stable_mosaic.version = 11 : i64} {
  func.func @_kernel_vmem_table(%arg0: i32, %arg1: i32, %arg2: memref<2x8xi32, #tpu.memory_space<smem>>, %arg3: memref<16x32xf32, #tpu.memory_space<vmem>>, %arg4: memref<8x32xf32, #tpu.memory_space<vmem>>, %arg5: memref<1x8x32xf32, #tpu.memory_space<vmem>>) attributes {dimension_semantics = [#tpu.dimension_semantics<parallel>, #tpu.dimension_semantics<parallel>], iteration_bounds = array<i64: 2, 1>, scalar_prefetch = 1 : i64, scratch_operands = 0 : i64, tpu.core_type = #tpu.core_type<tc>, window_params = [{pipeline_mode = #tpu.pipeline_mode<synchronous>, transform_indices = @transform_0, window_bounds = array<i64: 16, 32>}, {transform_indices = @transform_1, window_bounds = array<i64: 8, 32>}, {transform_indices = @transform_2, window_bounds = array<i64: 1, 8, 32>}]} {
    %c8_i32 = arith.constant 8 : i32
    %0 = arith.muli %arg1, %c8_i32 : i32
    %c0_i32 = arith.constant 0 : i32
    %1 = arith.addi %0, %c0_i32 : i32
    %2 = arith.index_cast %arg0 : i32 to index
    %3 = arith.index_cast %1 : i32 to index
    %4 = memref.load %arg2[%2, %3] : memref<2x8xi32, #tpu.memory_space<smem>>
    %5 = arith.index_cast %4 : i32 to index
    %c0 = arith.constant 0 : index
    %6 = vector.load %arg3[%5, %c0] : memref<16x32xf32, #tpu.memory_space<vmem>>, vector<1x32xf32>
    %c0_0 = arith.constant 0 : index
    %c0_1 = arith.constant 0 : index
    %c0_2 = arith.constant 0 : index
    %7 = vector.load %arg5[%c0_0, %c0_1, %c0_2] : memref<1x8x32xf32, #tpu.memory_space<vmem>>, vector<1x1x32xf32>
    %8 = vector.shape_cast %7 : vector<1x1x32xf32> to vector<1x32xf32>
    %9 = vector.shape_cast %6 : vector<1x32xf32> to vector<1x1x32xf32>
    tpu.vector_store %arg5[%c0_0, %c0_1, %c0_2], %9 {strides = array<i32>} : memref<1x8x32xf32, #tpu.memory_space<vmem>>, vector<1x1x32xf32>,
    %c1_i32 = arith.constant 1 : i32
    %10 = arith.addi %0, %c1_i32 : i32
    %11 = arith.index_cast %arg0 : i32 to index
    %12 = arith.index_cast %10 : i32 to index
    %13 = memref.load %arg2[%11, %12] : memref<2x8xi32, #tpu.memory_space<smem>>
    %14 = arith.index_cast %13 : i32 to index
    %c0_3 = arith.constant 0 : index
    %15 = vector.load %arg3[%14, %c0_3] : memref<16x32xf32, #tpu.memory_space<vmem>>, vector<1x32xf32>
    %c0_4 = arith.constant 0 : index
    %c1 = arith.constant 1 : index
    %c0_5 = arith.constant 0 : index
    %16 = vector.load %arg5[%c0_4, %c1, %c0_5] : memref<1x8x32xf32, #tpu.memory_space<vmem>>, vector<1x1x32xf32>
    %17 = vector.shape_cast %16 : vector<1x1x32xf32> to vector<1x32xf32>
    %18 = vector.shape_cast %15 : vector<1x32xf32> to vector<1x1x32xf32>
    tpu.vector_store %arg5[%c0_4, %c1, %c0_5], %18 {strides = array<i32>} : memref<1x8x32xf32, #tpu.memory_space<vmem>>, vector<1x1x32xf32>,
    %c2_i32 = arith.constant 2 : i32
    %19 = arith.addi %0, %c2_i32 : i32
    %20 = arith.index_cast %arg0 : i32 to index
    %21 = arith.index_cast %19 : i32 to index
    %22 = memref.load %arg2[%20, %21] : memref<2x8xi32, #tpu.memory_space<smem>>
    %23 = arith.index_cast %22 : i32 to index
    %c0_6 = arith.constant 0 : index
    %24 = vector.load %arg3[%23, %c0_6] : memref<16x32xf32, #tpu.memory_space<vmem>>, vector<1x32xf32>
    %c0_7 = arith.constant 0 : index
    %c2 = arith.constant 2 : index
    %c0_8 = arith.constant 0 : index
    %25 = vector.load %arg5[%c0_7, %c2, %c0_8] : memref<1x8x32xf32, #tpu.memory_space<vmem>>, vector<1x1x32xf32>
    %26 = vector.shape_cast %25 : vector<1x1x32xf32> to vector<1x32xf32>
    %27 = vector.shape_cast %24 : vector<1x32xf32> to vector<1x1x32xf32>
    tpu.vector_store %arg5[%c0_7, %c2, %c0_8], %27 {strides = array<i32>} : memref<1x8x32xf32, #tpu.memory_space<vmem>>, vector<1x1x32xf32>,
    %c3_i32 = arith.constant 3 : i32
    %28 = arith.addi %0, %c3_i32 : i32
    %29 = arith.index_cast %arg0 : i32 to index
    %30 = arith.index_cast %28 : i32 to index
    %31 = memref.load %arg2[%29, %30] : memref<2x8xi32, #tpu.memory_space<smem>>
    %32 = arith.index_cast %31 : i32 to index
    %c0_9 = arith.constant 0 : index
    %33 = vector.load %arg3[%32, %c0_9] : memref<16x32xf32, #tpu.memory_space<vmem>>, vector<1x32xf32>
    %c0_10 = arith.constant 0 : index
    %c3 = arith.constant 3 : index
    %c0_11 = arith.constant 0 : index
    %34 = vector.load %arg5[%c0_10, %c3, %c0_11] : memref<1x8x32xf32, #tpu.memory_space<vmem>>, vector<1x1x32xf32>
    %35 = vector.shape_cast %34 : vector<1x1x32xf32> to vector<1x32xf32>
    %36 = vector.shape_cast %33 : vector<1x32xf32> to vector<1x1x32xf32>
    tpu.vector_store %arg5[%c0_10, %c3, %c0_11], %36 {strides = array<i32>} : memref<1x8x32xf32, #tpu.memory_space<vmem>>, vector<1x1x32xf32>,
    %c4_i32 = arith.constant 4 : i32
    %37 = arith.addi %0, %c4_i32 : i32
    %38 = arith.index_cast %arg0 : i32 to index
    %39 = arith.index_cast %37 : i32 to index
    %40 = memref.load %arg2[%38, %39] : memref<2x8xi32, #tpu.memory_space<smem>>
    %41 = arith.index_cast %40 : i32 to index
    %c0_12 = arith.constant 0 : index
    %42 = vector.load %arg3[%41, %c0_12] : memref<16x32xf32, #tpu.memory_space<vmem>>, vector<1x32xf32>
    %c0_13 = arith.constant 0 : index
    %c4 = arith.constant 4 : index
    %c0_14 = arith.constant 0 : index
    %43 = vector.load %arg5[%c0_13, %c4, %c0_14] : memref<1x8x32xf32, #tpu.memory_space<vmem>>, vector<1x1x32xf32>
    %44 = vector.shape_cast %43 : vector<1x1x32xf32> to vector<1x32xf32>
    %45 = vector.shape_cast %42 : vector<1x32xf32> to vector<1x1x32xf32>
    tpu.vector_store %arg5[%c0_13, %c4, %c0_14], %45 {strides = array<i32>} : memref<1x8x32xf32, #tpu.memory_space<vmem>>, vector<1x1x32xf32>,
    %c5_i32 = arith.constant 5 : i32
    %46 = arith.addi %0, %c5_i32 : i32
    %47 = arith.index_cast %arg0 : i32 to index
    %48 = arith.index_cast %46 : i32 to index
    %49 = memref.load %arg2[%47, %48] : memref<2x8xi32, #tpu.memory_space<smem>>
    %50 = arith.index_cast %49 : i32 to index
    %c0_15 = arith.constant 0 : index
    %51 = vector.load %arg3[%50, %c0_15] : memref<16x32xf32, #tpu.memory_space<vmem>>, vector<1x32xf32>
    %c0_16 = arith.constant 0 : index
    %c5 = arith.constant 5 : index
    %c0_17 = arith.constant 0 : index
    %52 = vector.load %arg5[%c0_16, %c5, %c0_17] : memref<1x8x32xf32, #tpu.memory_space<vmem>>, vector<1x1x32xf32>
    %53 = vector.shape_cast %52 : vector<1x1x32xf32> to vector<1x32xf32>
    %54 = vector.shape_cast %51 : vector<1x32xf32> to vector<1x1x32xf32>
    tpu.vector_store %arg5[%c0_16, %c5, %c0_17], %54 {strides = array<i32>} : memref<1x8x32xf32, #tpu.memory_space<vmem>>, vector<1x1x32xf32>,
    %c6_i32 = arith.constant 6 : i32
    %55 = arith.addi %0, %c6_i32 : i32
    %56 = arith.index_cast %arg0 : i32 to index
    %57 = arith.index_cast %55 : i32 to index
    %58 = memref.load %arg2[%56, %57] : memref<2x8xi32, #tpu.memory_space<smem>>
    %59 = arith.index_cast %58 : i32 to index
    %c0_18 = arith.constant 0 : index
    %60 = vector.load %arg3[%59, %c0_18] : memref<16x32xf32, #tpu.memory_space<vmem>>, vector<1x32xf32>
    %c0_19 = arith.constant 0 : index
    %c6 = arith.constant 6 : index
    %c0_20 = arith.constant 0 : index
    %61 = vector.load %arg5[%c0_19, %c6, %c0_20] : memref<1x8x32xf32, #tpu.memory_space<vmem>>, vector<1x1x32xf32>
    %62 = vector.shape_cast %61 : vector<1x1x32xf32> to vector<1x32xf32>
    %63 = vector.shape_cast %60 : vector<1x32xf32> to vector<1x1x32xf32>
    tpu.vector_store %arg5[%c0_19, %c6, %c0_20], %63 {strides = array<i32>} : memref<1x8x32xf32, #tpu.memory_space<vmem>>, vector<1x1x32xf32>,
    %c7_i32 = arith.constant 7 : i32
    %64 = arith.addi %0, %c7_i32 : i32
    %65 = arith.index_cast %arg0 : i32 to index
    %66 = arith.index_cast %64 : i32 to index
    %67 = memref.load %arg2[%65, %66] : memref<2x8xi32, #tpu.memory_space<smem>>
    %68 = arith.index_cast %67 : i32 to index
    %c0_21 = arith.constant 0 : index
    %69 = vector.load %arg3[%68, %c0_21] : memref<16x32xf32, #tpu.memory_space<vmem>>, vector<1x32xf32>
    %c0_22 = arith.constant 0 : index
    %c7 = arith.constant 7 : index
    %c0_23 = arith.constant 0 : index
    %70 = vector.load %arg5[%c0_22, %c7, %c0_23] : memref<1x8x32xf32, #tpu.memory_space<vmem>>, vector<1x1x32xf32>
    %71 = vector.shape_cast %70 : vector<1x1x32xf32> to vector<1x32xf32>
    %72 = vector.shape_cast %69 : vector<1x32xf32> to vector<1x1x32xf32>
    tpu.vector_store %arg5[%c0_22, %c7, %c0_23], %72 {strides = array<i32>} : memref<1x8x32xf32, #tpu.memory_space<vmem>>, vector<1x1x32xf32>,
    %c0_24 = arith.constant 0 : index
    %c0_25 = arith.constant 0 : index
    %c0_26 = arith.constant 0 : index
    %73 = vector.load %arg5[%c0_24, %c0_25, %c0_26] : memref<1x8x32xf32, #tpu.memory_space<vmem>>, vector<1x8x32xf32>
    %74 = vector.shape_cast %73 : vector<1x8x32xf32> to vector<8x32xf32>
    %c0_27 = arith.constant 0 : index
    %c0_28 = arith.constant 0 : index
    %75 = vector.load %arg4[%c0_27, %c0_28] : memref<8x32xf32, #tpu.memory_space<vmem>>, vector<8x32xf32>
    %76 = arith.addf %74, %75 : vector<8x32xf32>
    %cst = arith.constant 5.000000e-01 : f32
    %77 = vector.broadcast %cst : f32 to vector<8x32xf32>
    %78 = arith.mulf %77, %76 : vector<8x32xf32>
    %cst_29 = arith.constant 0.707106769 : f32
    %79 = vector.broadcast %cst_29 : f32 to vector<8x32xf32>
    %80 = arith.mulf %76, %79 : vector<8x32xf32>
    %81 = math.absf %80 : vector<8x32xf32>
    %cst_30 = arith.constant 0.327591091 : f32
    %82 = vector.broadcast %cst_30 : f32 to vector<8x32xf32>
    %83 = arith.mulf %82, %81 : vector<8x32xf32>
    %cst_31 = arith.constant 1.000000e+00 : f32
    %84 = vector.broadcast %cst_31 : f32 to vector<8x32xf32>
    %85 = arith.addf %84, %83 : vector<8x32xf32>
    %cst_32 = arith.constant 1.000000e+00 : f32
    %86 = vector.broadcast %cst_32 : f32 to vector<8x32xf32>
    %87 = arith.divf %86, %85 : vector<8x32xf32>
    %cst_33 = arith.constant 1.06140542 : f32
    %88 = vector.broadcast %cst_33 : f32 to vector<8x32xf32>
    %89 = arith.mulf %88, %87 : vector<8x32xf32>
    %cst_34 = arith.constant -1.45315206 : f32
    %90 = vector.broadcast %cst_34 : f32 to vector<8x32xf32>
    %91 = arith.addf %89, %90 : vector<8x32xf32>
    %92 = arith.mulf %91, %87 : vector<8x32xf32>
    %cst_35 = arith.constant 1.42141378 : f32
    %93 = vector.broadcast %cst_35 : f32 to vector<8x32xf32>
    %94 = arith.addf %92, %93 : vector<8x32xf32>
    %95 = arith.mulf %94, %87 : vector<8x32xf32>
    %cst_36 = arith.constant -0.284496725 : f32
    %96 = vector.broadcast %cst_36 : f32 to vector<8x32xf32>
    %97 = arith.addf %95, %96 : vector<8x32xf32>
    %98 = arith.mulf %97, %87 : vector<8x32xf32>
    %cst_37 = arith.constant 0.254829586 : f32
    %99 = vector.broadcast %cst_37 : f32 to vector<8x32xf32>
    %100 = arith.addf %98, %99 : vector<8x32xf32>
    %101 = arith.mulf %100, %87 : vector<8x32xf32>
    %102 = arith.mulf %81, %81 : vector<8x32xf32>
    %cst_38 = arith.constant 0.000000e+00 : f32
    %103 = vector.broadcast %cst_38 : f32 to vector<8x32xf32>
    %104 = arith.subf %103, %102 : vector<8x32xf32>
    %105 = math.exp %104 : vector<8x32xf32>
    %106 = arith.mulf %101, %105 : vector<8x32xf32>
    %cst_39 = arith.constant 1.000000e+00 : f32
    %107 = vector.broadcast %cst_39 : f32 to vector<8x32xf32>
    %108 = arith.subf %107, %106 : vector<8x32xf32>
    %cst_40 = arith.constant 0.000000e+00 : f32
    %109 = vector.broadcast %cst_40 : f32 to vector<8x32xf32>
    %110 = arith.cmpf oge, %80, %109 : vector<8x32xf32>
    %cst_41 = arith.constant 0.000000e+00 : f32
    %111 = vector.broadcast %cst_41 : f32 to vector<8x32xf32>
    %112 = arith.subf %111, %108 : vector<8x32xf32>
    %113 = arith.select %110, %108, %112 : vector<8x32xi1>, vector<8x32xf32>
    %cst_42 = arith.constant 1.000000e+00 : f32
    %114 = vector.broadcast %cst_42 : f32 to vector<8x32xf32>
    %115 = arith.addf %114, %113 : vector<8x32xf32>
    %116 = arith.mulf %78, %115 : vector<8x32xf32>
    %c0_43 = arith.constant 0 : index
    %c0_44 = arith.constant 0 : index
    %c0_45 = arith.constant 0 : index
    %117 = vector.load %arg5[%c0_43, %c0_44, %c0_45] : memref<1x8x32xf32, #tpu.memory_space<vmem>>, vector<1x8x32xf32>
    %118 = vector.shape_cast %117 : vector<1x8x32xf32> to vector<8x32xf32>
    %119 = vector.shape_cast %116 : vector<8x32xf32> to vector<1x8x32xf32>
    tpu.vector_store %arg5[%c0_43, %c0_44, %c0_45], %119 {strides = array<i32>} : memref<1x8x32xf32, #tpu.memory_space<vmem>>, vector<1x8x32xf32>,
    return
  }
  func.func @transform_0(%arg0: i32, %arg1: i32, %arg2: memref<2x8xi32, #tpu.memory_space<smem>>) -> (i32, i32) {
    %c0_i32 = arith.constant 0 : i32
    %c0_i32_0 = arith.constant 0 : i32
    %c0_i32_1 = arith.constant 0 : i32
    return %c0_i32, %c0_i32_0 : i32, i32
  }
  func.func @transform_1(%arg0: i32, %arg1: i32, %arg2: memref<2x8xi32, #tpu.memory_space<smem>>) -> (i32, i32) {
    %c0_i32 = arith.constant 0 : i32
    %c0_i32_0 = arith.constant 0 : i32
    return %arg1, %c0_i32 : i32, i32
  }
  func.func @transform_2(%arg0: i32, %arg1: i32, %arg2: memref<2x8xi32, #tpu.memory_space<smem>>) -> (i32, i32, i32) {
    %c0_i32 = arith.constant 0 : i32
    %c0_i32_0 = arith.constant 0 : i32
    return %arg0, %arg1, %c0_i32 : i32, i32, i32
  }
}

</mosaic_0001>

<llo_original>
// kernel: tpu_custom_call.1
$region0: #{tpu_custom_call.1}
  #allocation0 [shape = 'u32[]', space=smem, size = 0x4, offset = 0x4, fixed_abs, tag = 'smem constant byte address 0x4 - core index']
  #allocation1 [shape = 'u32[144,128]{1,0:T(1,128)}', space=vmem, size = 0x12000, scoped, tag = 'internal scratch']
  #allocation2 [shape = 's32[1]{0}', space=sflag, size = 0x4, scoped, tag = 'scoped memory for tpu_custom_call.1']
  #allocation3 [shape = 'u8[1024]{0}', space=smem, size = 0x400, scoped, tag = 'prefetched SMEM operand 0']
  %s0 = inlined_call_operand.hbm [shape: s32[2,8], index: 0, kind: input, shape index: {}]
  %s1 = inlined_call_operand.hbm [shape: f32[16,32], index: 1, kind: input, shape index: {}]
  %s2 = inlined_call_operand.hbm [shape: f32[8,32], index: 2, kind: input, shape index: {}]
  %s3 = inlined_call_operand.hbm [shape: f32[2,8,32], index: 3, kind: output, shape index: {}]
  %s4 = sld [smem:[#allocation0]]
  $region49: #{tpu_custom_call.1} parent=0
    _
  %s6 = ssub.s32 1, %s4
  %s7 = scalar_select 0, %s6, %s4
  %9 = dma.hbm_to_smem %s0, 32, [#allocation3], [#allocation2]
  %10 = dma.done [#allocation2], 32
  %11 = sfence
  $region1: #{tpu_custom_call.1} parent=0
    #allocation4 [shape = 'u8[8192]{0}', space=vmem, size = 0x2000, scoped, tag = 'input window, operand 1, single buffered']
    #allocation5 [shape = 's32[2]{0}', space=sflag, size = 0x8, scoped, tag = 'scoped memory for tpu_custom_call.1']
    #allocation6 [shape = 's32[2]{0}', space=sflag, size = 0x8, scoped, tag = 'scoped memory for tpu_custom_call.1']
    #allocation7 [shape = 'u8[4096]{0}', space=vmem, size = 0x1000, scoped, tag = 'input window, operand 2, single buffered']
    #allocation8 [shape = 's32[1]{0}', space=sflag, size = 0x4, scoped, tag = 'scoped memory for tpu_custom_call.1']
    #allocation9 [shape = 'u8[8192]{0}', space=vmem, size = 0x2000, scoped, tag = 'output window, operand 0']
    %12 = vsyncpa [#allocation5], 0
    %13 = vsyncpa [#allocation8], 0
    %14 = vsyncpa [#allocation6], 0
    %s15 = scalar_lea.sflag [#allocation6], 1
    %16 = vsyncpa %s15, 0
    loop: start=0, step=1, limit=4
    $region2: #{tpu_custom_call.1} parent=1 // loop_pre_header
      _
    $region3: #{tpu_custom_call.1} parent=1 // loop_header
      %s18 = sphi 0, %s22
      %p19 = scmp.ge.s32.totalorder %s18, 4
      %s25 = sphi 0, %s37
      %s26 = sphi 0, %s33
      %s27 = sphi 0, %s25
      %s28 = sphi 0, %s26
      %s29 = sphi 0, %s27
      %s30 = sphi 0, %s28
      %s38 = sphi 0, %s38
      %s40 = sphi 0, %s38
      %s41 = sphi 0, %s40
      %s55 = sphi 0, %s41
      %s61 = sphi 0, %s63
      %s64 = sphi 0, %s61
      %s65 = sphi 0, %s64
      %s81 = sphi 0, %s65
      %s89 = sphi 0, %s91
      %s92 = sphi 0, %s89
      %s93 = sphi 0, %s92
      %s109 = sphi 0, %s93
    $region4: #{tpu_custom_call.1} parent=1 // loop_header_branch
      %21 = sbr.rel (%p19) target = $region8
    $region5: #{tpu_custom_call.1} parent=1 // loop_body
      %s23 = ssub.s32 %s18, 1
      %s24 = ssub.s32 %s18, 2
      %s31 = sadd.s32 1, %s26
      %p32 = scmp.ge.s32.totalorder %s31, 1
      %s33 = scalar_select %p32, 0, %s31
      %s34 = sadd.s32 1, %s25
      %s35 = scalar_select %p32, %s34, %s25
      %p36 = scmp.ge.s32.totalorder %s35, 2
      %s37 = scalar_select %p36, 0, %s35
      %s39 = sadd.s32 %s38, 1
      %p42 = scmp.eq.s32.totalorder %s18, 1
      %p43 = scmp.ne.s32.totalorder %s38, %s40
      %p44 = scmp.eq.s32.totalorder %s18, 0
      %p45 = por %p43, %p44
      %p46 = scmp.ne.s32.totalorder %s38, %s40
      %p47 = scmp.eq.s32.totalorder %s23, 1
      %p48 = por %p46, %p47
      %p49 = scmp.ne.s32.totalorder %s40, %s41
      %p50 = scmp.eq.s32.totalorder %s23, 0
      %p51 = por %p49, %p50
      %p52 = scmp.ne.s32.totalorder %s40, %s41
      %p53 = scmp.eq.s32.totalorder %s24, 1
      %p54 = por %p52, %p53
      %p56 = scmp.ne.s32.totalorder %s41, %s55
      %p57 = scmp.eq.s32.totalorder %s24, 0
      %p58 = por %p56, %p57
      %s59 = ssub.s32 %s26, %s33
      %p60 = scmp.eq.s32.totalorder %s59, 0
      %s62 = sadd.s32 %s61, 1
      %s63 = scalar_select %p60, %s61, %s62
      %p66 = pneg %p60
      %p67 = scmp.eq.s32.totalorder %s18, 1
      %p68 = por %p66, %p67
      %p69 = scmp.ne.s32.totalorder %s61, %s64
      %p70 = scmp.eq.s32.totalorder %s18, 0
      %p71 = por %p69, %p70
      %p72 = scmp.ne.s32.totalorder %s61, %s64
      %p73 = scmp.eq.s32.totalorder %s23, 1
      %p74 = por %p72, %p73
      %p75 = scmp.ne.s32.totalorder %s64, %s65
      %p76 = scmp.eq.s32.totalorder %s23, 0
      %p77 = por %p75, %p76
      %p78 = scmp.ne.s32.totalorder %s64, %s65
      %p79 = scmp.eq.s32.totalorder %s24, 1
      %p80 = por %p78, %p79
      %p82 = scmp.ne.s32.totalorder %s65, %s81
      %p83 = scmp.eq.s32.totalorder %s24, 0
      %p84 = por %p82, %p83
      %s85 = ssub.s32 %s25, %s37
      %s86 = ssub.s32 %s26, %s33
      %s87 = sor.u32 %s85, %s86
      %p88 = scmp.eq.s32.totalorder %s87, 0
      %s90 = sadd.s32 %s89, 1
      %s91 = scalar_select %p88, %s89, %s90
      %p94 = pneg %p88
      %p95 = scmp.eq.s32.totalorder %s18, 1
      %p96 = por %p94, %p95
      %p97 = scmp.ne.s32.totalorder %s89, %s92
      %p98 = scmp.eq.s32.totalorder %s18, 0
      %p99 = por %p97, %p98
      %p100 = scmp.ne.s32.totalorder %s89, %s92
      %p101 = scmp.eq.s32.totalorder %s23, 1
      %p102 = por %p100, %p101
      %p103 = scmp.ne.s32.totalorder %s92, %s93
      %p104 = scmp.eq.s32.totalorder %s23, 0
      %p105 = por %p103, %p104
      %p106 = scmp.ne.s32.totalorder %s92, %s93
      %p107 = scmp.eq.s32.totalorder %s24, 1
      %p108 = por %p106, %p107
      %p110 = scmp.ne.s32.totalorder %s93, %s109
      %p111 = scmp.eq.s32.totalorder %s24, 0
      %p112 = por %p110, %p111
      %p113 = scmp.le.s32.totalorder 1, %s18
      %p114 = scmp.lt.s32.totalorder %s18, 3
      %p115 = pnand %p113, %p114
      %p116 = pneg %p115
      // Predicated region
      $region9: #{tpu_custom_call.1} parent=5 // pred_check
        _
      $region10: #{tpu_custom_call.1} parent=5 // pred_check_branch
        %118 = sbr.rel (%p115) target = $region12
      $region11: #{tpu_custom_call.1} parent=5 // pred_region
        %s119 = ssub.s32 %s18, 1
        // Predicated region
        $region13: #{tpu_custom_call.1} parent=11 // pred_check
          %p120 = pneg %p51
        $region14: #{tpu_custom_call.1} parent=11 // pred_check_branch
          %122 = sbr.rel (%p120) target = $region16
        $region15: #{tpu_custom_call.1} parent=11 // pred_region
          %s124 = ssub.s32 256, 256
          %125 = vsyncadd [#allocation5], %s124
          %s126 = sshll.u32 [#allocation4], 4
          %s127 = int_to_ptr.vmem [resolvable:$true] %s126
          %132 = dma.hbm_to_vmem [thread:$0]  %s1, 256, %s127, [#allocation5], 128, 128, 8
        $region16: #{tpu_custom_call.1} parent=11 // pred_fallthru
          _
        // Predicated region
        $region17: #{tpu_custom_call.1} parent=11 // pred_check
          %p133 = pneg %p77
        $region18: #{tpu_custom_call.1} parent=11 // pred_check_branch
          %135 = sbr.rel (%p133) target = $region20
        $region19: #{tpu_custom_call.1} parent=11 // pred_region
          %s137 = ssub.s32 128, 128
          %138 = vsyncadd [#allocation8], %s137
          %s139 = smul.addr %s28, 128
          %s140 = scalar_lea.hbm %s2, %s139
          %s142 = sshll.u32 [#allocation7], 4
          %s143 = int_to_ptr.vmem [resolvable:$true] %s142
          %145 = dma.hbm_to_vmem [thread:$0]  %s140, 128, %s143, [#allocation8]
        $region20: #{tpu_custom_call.1} parent=11 // pred_fallthru
          _
      $region12: #{tpu_custom_call.1} parent=5 // pred_fallthru
        _
      %p146 = scmp.lt.s32.totalorder %s18, 2
      // Predicated region
      $region21: #{tpu_custom_call.1} parent=5 // pred_check
        %p147 = pneg %p146
      $region22: #{tpu_custom_call.1} parent=5 // pred_check_branch
        %149 = sbr.rel (%p147) target = $region24
      $region23: #{tpu_custom_call.1} parent=5 // pred_region
        _
      $region24: #{tpu_custom_call.1} parent=5 // pred_fallthru
        _
      %p150 = scmp.le.s32.totalorder 1, %s18
      %p151 = scmp.lt.s32.totalorder %s18, 3
      %p152 = pnand %p150, %p151
      %p153 = pneg %p152
      // Predicated region
      $region25: #{tpu_custom_call.1} parent=5 // pred_check
        _
      $region26: #{tpu_custom_call.1} parent=5 // pred_check_branch
        %155 = sbr.rel (%p152) target = $region28
      $region27: #{tpu_custom_call.1} parent=5 // pred_region
        %s156 = ssub.s32 %s18, 1
        // Predicated region
        $region29: #{tpu_custom_call.1} parent=27 // pred_check
          %p157 = pneg %p51
        $region30: #{tpu_custom_call.1} parent=27 // pred_check_branch
          %159 = sbr.rel (%p157) target = $region32
        $region31: #{tpu_custom_call.1} parent=27 // pred_region
          %160 = dma.done [#allocation5], 256
        $region32: #{tpu_custom_call.1} parent=27 // pred_fallthru
          _
        // Predicated region
        $region33: #{tpu_custom_call.1} parent=27 // pred_check
          %p161 = pneg %p77
        $region34: #{tpu_custom_call.1} parent=27 // pred_check_branch
          %163 = sbr.rel (%p161) target = $region36
        $region35: #{tpu_custom_call.1} parent=27 // pred_region
          %164 = dma.done [#allocation8], 128
        $region36: #{tpu_custom_call.1} parent=27 // pred_fallthru
          _
        %p165 = pneg %p51
        %p166 = pneg %p48
        %p167 = pneg %p77
        %p168 = pneg %p74
        %p169 = pneg %p105
        %p170 = pneg %p102
        %s171 = sand.u32 %s92, 1
        %s172 = scalar_lea.sflag [#allocation6], %s171
        %s173 = sand.u32 %s92, 1
        %s174 = smul.addr %s173, 8
        %s175 = scalar_lea.vmem [#allocation9], %s174
        %s176 = smul.u32 %s28, 8
        %s177 = sshra.s32 %s176, 7
        %s178 = sand.u32 %s176, 127
        %s179 = sadd.s32 %s177, %s27
        %s180 = smul.u32 %s179, 128
        %s181 = sshra.s32 %s176, 7
        %s182 = sand.u32 %s176, 127
        %s183 = sadd.s32 %s180, %s182
        %s184 = sld [smem:[#allocation3 + %s183]]
        %s185 = scalar_lea.vmem [#allocation4], %s184
        %v186 = vld [vmem:[%s185] sm:$0x1]
        %vm187 = vcmask 253952
        %188 = vst.msk [vmem:[%s175] sm:$0x1] %vm187, %v186
        %s189 = sadd.s32 %s176, 1
        %s190 = sshra.s32 %s189, 7
        %s191 = sand.u32 %s189, 127
        %s192 = sadd.s32 %s190, %s27
        %s193 = smul.u32 %s192, 128
        %s194 = sshra.s32 %s189, 7
        %s195 = sand.u32 %s189, 127
        %s196 = sadd.s32 %s193, %s195
        %s197 = sld [smem:[#allocation3 + %s196]]
        %s198 = scalar_lea.vmem [#allocation4], %s197
        %v199 = vld [vmem:[%s198] sm:$0x1]
        %200 = vst.msk [vmem:[%s175 + $0x1] sm:$0x1] %vm187, %v199
        %s201 = sadd.s32 %s176, 2
        %s202 = sshra.s32 %s201, 7
        %s203 = sand.u32 %s201, 127
        %s204 = sadd.s32 %s202, %s27
        %s205 = smul.u32 %s204, 128
        %s206 = sshra.s32 %s201, 7
        %s207 = sand.u32 %s201, 127
        %s208 = sadd.s32 %s205, %s207
        %s209 = sld [smem:[#allocation3 + %s208]]
        %s210 = scalar_lea.vmem [#allocation4], %s209
        %v211 = vld [vmem:[%s210] sm:$0x1]
        %212 = vst.msk [vmem:[%s175 + $0x2] sm:$0x1] %vm187, %v211
        %s213 = sadd.s32 %s176, 3
        %s214 = sshra.s32 %s213, 7
        %s215 = sand.u32 %s213, 127
        %s216 = sadd.s32 %s214, %s27
        %s217 = smul.u32 %s216, 128
        %s218 = sshra.s32 %s213, 7
        %s219 = sand.u32 %s213, 127
        %s220 = sadd.s32 %s217, %s219
        %s221 = sld [smem:[#allocation3 + %s220]]
        %s222 = scalar_lea.vmem [#allocation4], %s221
        %v223 = vld [vmem:[%s222] sm:$0x1]
        %224 = vst.msk [vmem:[%s175 + $0x3] sm:$0x1] %vm187, %v223
        %s225 = sadd.s32 %s176, 4
        %s226 = sshra.s32 %s225, 7
        %s227 = sand.u32 %s225, 127
        %s228 = sadd.s32 %s226, %s27
        %s229 = smul.u32 %s228, 128
        %s230 = sshra.s32 %s225, 7
        %s231 = sand.u32 %s225, 127
        %s232 = sadd.s32 %s229, %s231
        %s233 = sld [smem:[#allocation3 + %s232]]
        %s234 = scalar_lea.vmem [#allocation4], %s233
        %v235 = vld [vmem:[%s234] sm:$0x1]
        %236 = vst.msk [vmem:[%s175 + $0x4] sm:$0x1] %vm187, %v235
        %s237 = sadd.s32 %s176, 5
        %s238 = sshra.s32 %s237, 7
        %s239 = sand.u32 %s237, 127
        %s240 = sadd.s32 %s238, %s27
        %s241 = smul.u32 %s240, 128
        %s242 = sshra.s32 %s237, 7
        %s243 = sand.u32 %s237, 127
        %s244 = sadd.s32 %s241, %s243
        %s245 = sld [smem:[#allocation3 + %s244]]
        %s246 = scalar_lea.vmem [#allocation4], %s245
        %v247 = vld [vmem:[%s246] sm:$0x1]
        %248 = vst.msk [vmem:[%s175 + $0x5] sm:$0x1] %vm187, %v247
        %s249 = sadd.s32 %s176, 6
        %s250 = sshra.s32 %s249, 7
        %s251 = sand.u32 %s249, 127
        %s252 = sadd.s32 %s250, %s27
        %s253 = smul.u32 %s252, 128
        %s254 = sshra.s32 %s249, 7
        %s255 = sand.u32 %s249, 127
        %s256 = sadd.s32 %s253, %s255
        %s257 = sld [smem:[#allocation3 + %s256]]
        %s258 = scalar_lea.vmem [#allocation4], %s257
        %v259 = vld [vmem:[%s258] sm:$0x1]
        %260 = vst.msk [vmem:[%s175 + $0x6] sm:$0x1] %vm187, %v259
        %s261 = sadd.s32 %s176, 7
        %s262 = sshra.s32 %s261, 7
        %s263 = sand.u32 %s261, 127
        %s264 = sadd.s32 %s262, %s27
        %s265 = smul.u32 %s264, 128
        %s266 = sshra.s32 %s261, 7
        %s267 = sand.u32 %s261, 127
        %s268 = sadd.s32 %s265, %s267
        %s269 = sld [smem:[#allocation3 + %s268]]
        %s270 = scalar_lea.vmem [#allocation4], %s269
        %v271 = vld [vmem:[%s270] sm:$0x1]
        %272 = vst.msk [vmem:[%s175 + $0x7] sm:$0x1] %vm187, %v271
        %v273 = vld [vmem:[%s175] sm:$0xff]
        %v274 = vld [vmem:[#allocation7] sm:$0xff]
        %v275 = vadd.f32 %v273, %v274
        %v276 = vmul.f32 %v275, 0.5
        %v277 = vmul.f32 %v275, 0.70710677
        %v278 = vand.u32 2147483647, %v277
        %v279 = vmul.f32 %v278, 0.3275911
        %v280 = vadd.f32 %v279, 1.0
        %v281 = vrcp.pop %v280
        %v282 = vmul.f32 1.0, %v281
        %v283 = vmul.f32 %v282, 1.0614054
        %v284 = vadd.f32 %v283, -1.4531521
        %v285 = vmul.f32 %v284, %v282
        %v286 = vadd.f32 %v285, 1.4214138
        %v287 = vmul.f32 %v286, %v282
        %v288 = vadd.f32 %v287, -0.28449672
        %v289 = vmul.f32 %v288, %v282
        %v290 = vadd.f32 %v289, 0.2548296
        %v291 = vmul.f32 %v290, %v282
        %v292 = vmul.f32 %v278, %v278
        %v293 = vsub.f32 0.0, %v292
        %v294 = vmul.f32 %v293, 1.442695
        %v295 = vpow.pop %v294
        %v296 = vmul.f32 %v291, %v295
        %v297 = vsub.f32 1.0, %v296
        %vm298 = vcmp.ge.f32.partialorder %v277, 0.0
        %v299 = vsub.f32 0.0, %v297
        %v300 = vsel %vm298, %v297, %v299
        %v301 = vadd.f32 %v300, 1.0
        %v302 = vmul.f32 %v276, %v301
        %vm303 = vcmask 261120
        %304 = vst.msk [vmem:[%s175] sm:$0xff] %vm303, %v302
        %s305 = sand.u32 %s92, 1
        %s306 = scalar_lea.sflag [#allocation6], %s305
        %s307 = sand.u32 %s92, 1
        %s308 = smul.addr %s307, 8
        %s309 = scalar_lea.vmem [#allocation9], %s308
        // Predicated region
        $region37: #{tpu_custom_call.1} parent=27 // pred_check
          %p310 = pneg %p102
        $region38: #{tpu_custom_call.1} parent=27 // pred_check_branch
          %312 = sbr.rel (%p310) target = $region40
        $region39: #{tpu_custom_call.1} parent=27 // pred_region
          %s314 = ssub.s32 128, 128
          %315 = vsyncadd %s306, %s314
          %s316 = sadd.s32 %s28, %s27
          %s317 = smul.addr %s316, 128
          %s318 = scalar_lea.hbm %s3, %s317
          %s320 = sshll.u32 %s309, 4
          %s321 = int_to_ptr.vmem [resolvable:$true] %s320
          %323 = dma.vmem_to_hbm [thread:$0]  %s321, 128, %s318, %s306
        $region40: #{tpu_custom_call.1} parent=27 // pred_fallthru
          _
      $region28: #{tpu_custom_call.1} parent=5 // pred_fallthru
        _
      %p324 = scmp.le.s32.totalorder 2, %s18
      // Predicated region
      $region41: #{tpu_custom_call.1} parent=5 // pred_check
        %p325 = pneg %p324
      $region42: #{tpu_custom_call.1} parent=5 // pred_check_branch
        %327 = sbr.rel (%p325) target = $region44
      $region43: #{tpu_custom_call.1} parent=5 // pred_region
        %s328 = ssub.s32 %s18, 2
        // Predicated region
        $region45: #{tpu_custom_call.1} parent=43 // pred_check
          %p329 = pneg %p108
        $region46: #{tpu_custom_call.1} parent=43 // pred_check_branch
          %331 = sbr.rel (%p329) target = $region48
        $region47: #{tpu_custom_call.1} parent=43 // pred_region
          %s332 = sand.u32 %s93, 1
          %s333 = scalar_lea.sflag [#allocation6], %s332
          %s334 = sand.u32 %s93, 1
          %s335 = smul.addr %s334, 8
          %s336 = scalar_lea.vmem [#allocation9], %s335
          %337 = dma.done %s333, 128
        $region48: #{tpu_custom_call.1} parent=43 // pred_fallthru
          _
      $region44: #{tpu_custom_call.1} parent=5 // pred_fallthru
        _
    $region6: #{tpu_custom_call.1} parent=1 // loop_footer
      %s22 = sadd.s32 1, %s18
    $region7: #{tpu_custom_call.1} parent=1 // loop_footer_branch
      %17 = sbr.rel target = $region3
    $region8: #{tpu_custom_call.1} parent=1 // loop_exit
      _
    %338 = vsyncpa [#allocation5], 1
    %s339 = scalar_lea.sflag [#allocation5], 1
    %340 = vsyncpa %s339, 1
    %341 = vsyncpa [#allocation8], 1
    %342 = vsyncpa [#allocation6], 1
    %s343 = scalar_lea.sflag [#allocation6], 1
    %344 = vsyncpa %s343, 1

</llo_original>
